<compile_context>
chip_gen: v7x
topology: tpu7x:2x2x1
jax: 0.10.0
libtpu: 0.0.40
codegen_flags: <defaults>
</compile_context>

<pallas_src>
import functools

import jax
import jax.numpy as jnp
import numpy as np
from jax.experimental import pallas as pl
from jax.experimental.pallas import tpu as pltpu


def _round_up(x, m):
    return ((x + m - 1) // m) * m


def _ns_giou_kernel(pred_ref, tgt_ref, wt_ref, rmin_ref, rdiff_ref,
                    out_ref, acc_ref, *, eps, scale):
    # pred_ref: (4, 2, T, L) VMEM   tgt_ref: (4, 1, 1, L) VMEM
    # wt_ref:   (1, L) VMEM         rmin/rdiff: (T, 1) VMEM
    # out_ref:  (1, 1, L) VMEM      acc_ref:  (T, L) f32 VMEM scratch
    i = pl.program_id(1)

    @pl.when(i == 0)
    def _():
        acc_ref[...] = jnp.zeros_like(acc_ref)

    f32 = jnp.float32
    px1 = pred_ref[0].astype(f32)          # (2, T, L)
    py1 = pred_ref[1].astype(f32)
    px2 = pred_ref[2].astype(f32)
    py2 = pred_ref[3].astype(f32)
    tx1 = tgt_ref[0].astype(f32)           # (1, 1, L) -> broadcasts over (2, T, L)
    ty1 = tgt_ref[1].astype(f32)
    tx2 = tgt_ref[2].astype(f32)
    ty2 = tgt_ref[3].astype(f32)

    area_p = (px2 - px1) * (py2 - py1)
    area_t = (tx2 - tx1) * (ty2 - ty1)

    iw = jnp.maximum(jnp.minimum(px2, tx2) - jnp.maximum(px1, tx1), 0.0)
    ih = jnp.maximum(jnp.minimum(py2, ty2) - jnp.maximum(py1, ty1), 0.0)
    overlap = iw * ih
    union = jnp.maximum(area_p + area_t - overlap, eps)

    ew = jnp.maximum(jnp.maximum(px2, tx2) - jnp.minimum(px1, tx1), 0.0)
    eh = jnp.maximum(jnp.maximum(py2, ty2) - jnp.minimum(py1, ty1), 0.0)
    earea = jnp.maximum(ew * eh, eps)

    # loss = 1 - giou = (union - overlap)/union + (earea - union)/earea
    # folded into a single (exact) division so the accuracy matches the ref.
    num = (union - overlap) * earea + (earea - union) * union
    loss = num / (union * earea)           # (2, T, L)

    l0 = loss[0]                           # (T, L) node 0 of every tree
    l1 = loss[1]                           # (T, L) node 1
    rmin = rmin_ref[...]                   # (T, 1)
    rdiff = rdiff_ref[...]                 # (T, 1) = rho_max - rho_min
    # argmin-gets-rho_max folded without compares/selects (tie-insensitive):
    #   l0*d0 + l1*d1 = rmin*(l0+l1) + (rmax-rmin)*min(l0, l1)
    tree_loss = rmin * (l0 + l1) + rdiff * jnp.minimum(l0, l1)

    wt = wt_ref[...].astype(f32)           # (1, L)
    acc_ref[...] += tree_loss * wt

    @pl.when(i == pl.num_programs(1) - 1)
    def _():
        out_ref[0] = jnp.sum(acc_ref[...], axis=0, keepdims=True) * scale


def ns_giou_loss_pallas(pred, aa, target, weight, rho_min, rho_max, *,
                        loss_weight=1.0, eps=1e-7, reduction="mean",
                        avg_factor=None, tile_n=2048):
    """Pallas implementation of NSGIoULoss.forward (reduction='mean')."""
    del aa  # unused by the reference implementation as well
    assert reduction == "mean" and avg_factor is None
    # TODO(synk): 'none'/'sum' reductions and avg_factor are not implemented.

    N, C = pred.shape
    box_dim = target.shape[1]              # 4
    G = C // box_dim
    num_trees = G // 2
    assert G == 2 * num_trees, "NSGIoULoss assumes 2 nodes per tree"
    assert tile_n % 128 == 0
    assert target.shape[0] == N and N > 0

    if weight.ndim > 1:
        weight = weight[:, 0]

    # Coordinate-major relayout: (N, 4G) -> (coord=4, node=2, tree, N).
    # TODO(synk): ideally the producer emits this layout directly (or the
    # relayout is fused in-kernel via XLU transposes) to avoid one extra HBM
    # pass over `pred`; here it is a single XLA transpose on the host side.
    pred_t = jnp.transpose(pred.reshape(N, num_trees, 2, box_dim), (3, 2, 1, 0))
    tgt_t = jnp.transpose(target, (1, 0)).reshape(box_dim, 1, 1, N)
    wt = weight.reshape(1, N)

    # Adaptive tile: no larger than half of N (rounded up to 128) so padding
    # overhead stays < one 128-lane slab per core even for mid-size N.
    tile = min(tile_n, max(128, _round_up(-(-N // 2), 128)))
    n_pad = _round_up(N, 2 * tile)                 # even # of tiles -> 2 cores
    pad = n_pad - N
    if pad:
        pred_t = jnp.pad(pred_t, ((0, 0), (0, 0), (0, 0), (0, pad)))
        tgt_t = jnp.pad(tgt_t, ((0, 0), (0, 0), (0, 0), (0, pad)))
        wt = jnp.pad(wt, ((0, 0), (0, pad)))       # weight=0 -> padded lanes add 0

    n_half = n_pad // (2 * tile)                   # inner tiles per TensorCore
    # mean over (N, G) elements, then 2/G, then loss_weight
    scale = float(loss_weight) * 2.0 / G / (N * G)

    rmin_v = rho_min.reshape(num_trees, 1).astype(jnp.float32)
    rdiff_v = (rho_max.reshape(num_trees, 1).astype(jnp.float32) - rmin_v)

    kernel = functools.partial(_ns_giou_kernel, eps=float(eps), scale=scale)

    partials = pl.pallas_call(
        kernel,
        out_shape=jax.ShapeDtypeStruct((2, 1, tile), jnp.float32),
        grid_spec=pltpu.PrefetchScalarGridSpec(
            num_scalar_prefetch=0,
            grid=(2, n_half),
            in_specs=[
                pl.BlockSpec((box_dim, 2, num_trees, tile),
                             lambda c, i: (0, 0, 0, c * n_half + i)),
                pl.BlockSpec((box_dim, 1, 1, tile),
                             lambda c, i: (0, 0, 0, c * n_half + i)),
                pl.BlockSpec((1, tile), lambda c, i: (0, c * n_half + i)),
                pl.BlockSpec((num_trees, 1), lambda c, i: (0, 0)),
                pl.BlockSpec((num_trees, 1), lambda c, i: (0, 0)),
            ],
            out_specs=pl.BlockSpec((1, 1, tile), lambda c, i: (c, 0, 0)),
            scratch_shapes=[pltpu.VMEM((num_trees, tile), jnp.float32)],
        ),
        compiler_params=pltpu.CompilerParams(
            dimension_semantics=("parallel", "arbitrary")),
    )(pred_t, tgt_t, wt, rmin_v, rdiff_v)

    # Add the two per-core lane partials (tiny (2, 1, tile) array).
    return jnp.sum(partials)


def ns_giou_loss_ref(pred, aa, target, weight, rho_min, rho_max,
                     *, loss_weight=1.0, eps=1e-7):
    """Plain-JAX reference mirroring the PyTorch code (deterministic rhos)."""
    del aa
    N, C = pred.shape
    G = C // target.shape[1]
    num_trees = G // 2
    p = pred.reshape(N, G, 4).astype(jnp.float32)
    t = target.astype(jnp.float32)[:, None, :]            # (N,1,4)
    area_p = (p[..., 2] - p[..., 0]) * (p[..., 3] - p[..., 1])
    area_t = (t[..., 2] - t[..., 0]) * (t[..., 3] - t[..., 1])
    lt = jnp.maximum(p[..., :2], t[..., :2])
    rb = jnp.minimum(p[..., 2:], t[..., 2:])
    wh = jnp.clip(rb - lt, 0.0)
    overlap = wh[..., 0] * wh[..., 1]
    union = jnp.maximum(area_p + area_t - overlap, eps)
    ious = overlap / union
    elt = jnp.minimum(p[..., :2], t[..., :2])
    erb = jnp.maximum(p[..., 2:], t[..., 2:])
    ewh = jnp.clip(erb - elt, 0.0)
    earea = jnp.maximum(ewh[..., 0] * ewh[..., 1], eps)
    gious = ious - (earea - union) / earea
    loss_ns = (1.0 - gious).reshape(N, num_trees, 2)
    target_n = jnp.argmin(loss_ns, axis=2)                 # (N, num_trees)
    rmin = rho_min[None, :, None]
    rmax = rho_max[None, :, None]
    node_idx = jnp.arange(2)[None, None, :]
    decay = jnp.where(node_idx == target_n[..., None], rmax, rmin)
    loss = (loss_ns * decay).reshape(N, G)
    if weight.ndim > 1:
        weight = weight[:, 0]
    loss = loss * weight[:, None].astype(jnp.float32)
    loss = jnp.mean(loss)
    return loss_weight * 2.0 * loss / G


def _make_inputs(key, N, G):
    num_trees = G // 2
    k1, k2, k3, k4, k5, k6, k7, k8 = jax.random.split(key, 8)
    pxy = jax.random.uniform(k1, (N, G, 2), minval=0.0, maxval=10.0)
    pwh = jax.random.uniform(k2, (N, G, 2), minval=1.0, maxval=5.0)
    pred = jnp.concatenate([pxy, pxy + pwh], axis=-1).reshape(N, 4 * G)
    txy = jax.random.uniform(k3, (N, 2), minval=0.0, maxval=10.0)
    twh = jax.random.uniform(k4, (N, 2), minval=1.0, maxval=5.0)
    target = jnp.concatenate([txy, txy + twh], axis=-1)
    aa = jax.nn.softmax(
        jax.random.normal(k5, (N, G)).reshape(N, num_trees, 2), axis=-1
    ).reshape(N, G)                                        # unused (as in torch)
    weight = jax.random.uniform(k6, (N,), minval=0.5, maxval=1.5)
    # Deterministic replacement for the per-tree np.random.uniform draws.
    rho_min = jax.random.uniform(k7, (num_trees,), minval=0.1, maxval=0.3)
    rho_max = jax.random.uniform(k8, (num_trees,), minval=0.9, maxval=1.1)
    return pred, aa, target, weight, rho_min, rho_max


if __name__ == "__main__":
    key = jax.random.PRNGKey(0)
    k_a, k_b, k_c = jax.random.split(key, 3)

    # Case 1: tiny shapes (N=16, G=8), single tile per core, exercises padding.
    inputs = _make_inputs(k_a, 16, 8)
    out = jax.block_until_ready(ns_giou_loss_pallas(*inputs, loss_weight=1.0))
    ref = ns_giou_loss_ref(*inputs, loss_weight=1.0)
    np.testing.assert_allclose(np.asarray(out), np.asarray(ref),
                               rtol=1e-5, atol=1e-6)

    # Case 2: multi-tile pipeline (grid (2, 3)) with a ragged tail (N=700).
    inputs = _make_inputs(k_b, 700, 8)
    out = jax.block_until_ready(
        ns_giou_loss_pallas(*inputs, loss_weight=1.0, tile_n=128))
    ref = ns_giou_loss_ref(*inputs, loss_weight=1.0)
    np.testing.assert_allclose(np.asarray(out), np.asarray(ref),
                               rtol=1e-5, atol=1e-6)

    # Case 3: default tile path with adaptive tile sizing (N=700, tile=384).
    inputs = _make_inputs(k_c, 700, 4)
    out = jax.block_until_ready(ns_giou_loss_pallas(*inputs, loss_weight=2.0))
    ref = ns_giou_loss_ref(*inputs, loss_weight=2.0)
    np.testing.assert_allclose(np.asarray(out), np.asarray(ref),
                               rtol=1e-5, atol=1e-6)

    print("KERNEL_OK")
</pallas_src>

<mosaic_0001>
module attributes {stable_mosaic.version = 11 : i64} {
  func.func @_ns_giou_kernel(%arg0: i32, %arg1: i32, %arg2: memref<4x2x4x128xf32, #tpu.memory_space<vmem>>, %arg3: memref<4x1x1x128xf32, #tpu.memory_space<vmem>>, %arg4: memref<1x128xf32, #tpu.memory_space<vmem>>, %arg5: memref<4x1xf32, #tpu.memory_space<vmem>>, %arg6: memref<4x1xf32, #tpu.memory_space<vmem>>, %arg7: memref<1x1x128xf32, #tpu.memory_space<vmem>>, %arg8: memref<4x128xf32, #tpu.memory_space<vmem>>) attributes {dimension_semantics = [#tpu.dimension_semantics<parallel>, #tpu.dimension_semantics<arbitrary>], iteration_bounds = array<i64: 2, 1>, scalar_prefetch = 0 : i64, scratch_operands = 1 : i64, tpu.core_type = #tpu.core_type<tc>, window_params = [{transform_indices = @transform_0, window_bounds = array<i64: 4, 2, 4, 128>}, {transform_indices = @transform_1, window_bounds = array<i64: 4, 1, 1, 128>}, {transform_indices = @transform_2, window_bounds = array<i64: 1, 128>}, {pipeline_mode = #tpu.pipeline_mode<synchronous>, transform_indices = @transform_3, window_bounds = array<i64: 4, 1>}, {pipeline_mode = #tpu.pipeline_mode<synchronous>, transform_indices = @transform_4, window_bounds = array<i64: 4, 1>}, {transform_indices = @transform_5, window_bounds = array<i64: 1, 1, 128>}]} {
    %c0_i32 = arith.constant 0 : i32
    %0 = arith.cmpi eq, %arg1, %c0_i32 : i32
    %1 = arith.extui %0 : i1 to i32
    %c0_i32_0 = arith.constant 0 : i32
    %2 = arith.cmpi ne, %1, %c0_i32_0 : i32
    scf.if %2 {
      %cst_46 = arith.constant 0.000000e+00 : f32
      %91 = vector.broadcast %cst_46 : f32 to vector<4x128xf32>
      %c0_47 = arith.constant 0 : index
      %c0_48 = arith.constant 0 : index
      %92 = vector.load %arg8[%c0_47, %c0_48] : memref<4x128xf32, #tpu.memory_space<vmem>>, vector<4x128xf32>
      tpu.vector_store %arg8[%c0_47, %c0_48], %91 {strides = array<i32>} : memref<4x128xf32, #tpu.memory_space<vmem>>, vector<4x128xf32>,
    } else {
    }
    %c0 = arith.constant 0 : index
    %c0_1 = arith.constant 0 : index
    %c0_2 = arith.constant 0 : index
    %c0_3 = arith.constant 0 : index
    %3 = vector.load %arg2[%c0, %c0_1, %c0_2, %c0_3] : memref<4x2x4x128xf32, #tpu.memory_space<vmem>>, vector<1x2x4x128xf32>
    %4 = vector.shape_cast %3 : vector<1x2x4x128xf32> to vector<2x4x128xf32>
    %c1 = arith.constant 1 : index
    %c0_4 = arith.constant 0 : index
    %c0_5 = arith.constant 0 : index
    %c0_6 = arith.constant 0 : index
    %5 = vector.load %arg2[%c1, %c0_4, %c0_5, %c0_6] : memref<4x2x4x128xf32, #tpu.memory_space<vmem>>, vector<1x2x4x128xf32>
    %6 = vector.shape_cast %5 : vector<1x2x4x128xf32> to vector<2x4x128xf32>
    %c2 = arith.constant 2 : index
    %c0_7 = arith.constant 0 : index
    %c0_8 = arith.constant 0 : index
    %c0_9 = arith.constant 0 : index
    %7 = vector.load %arg2[%c2, %c0_7, %c0_8, %c0_9] : memref<4x2x4x128xf32, #tpu.memory_space<vmem>>, vector<1x2x4x128xf32>
    %8 = vector.shape_cast %7 : vector<1x2x4x128xf32> to vector<2x4x128xf32>
    %c3 = arith.constant 3 : index
    %c0_10 = arith.constant 0 : index
    %c0_11 = arith.constant 0 : index
    %c0_12 = arith.constant 0 : index
    %9 = vector.load %arg2[%c3, %c0_10, %c0_11, %c0_12] : memref<4x2x4x128xf32, #tpu.memory_space<vmem>>, vector<1x2x4x128xf32>
    %10 = vector.shape_cast %9 : vector<1x2x4x128xf32> to vector<2x4x128xf32>
    %c0_13 = arith.constant 0 : index
    %c0_14 = arith.constant 0 : index
    %c0_15 = arith.constant 0 : index
    %c0_16 = arith.constant 0 : index
    %11 = vector.load %arg3[%c0_13, %c0_14, %c0_15, %c0_16] : memref<4x1x1x128xf32, #tpu.memory_space<vmem>>, vector<1x1x1x128xf32>
    %12 = vector.shape_cast %11 : vector<1x1x1x128xf32> to vector<1x1x128xf32>
    %c1_17 = arith.constant 1 : index
    %c0_18 = arith.constant 0 : index
    %c0_19 = arith.constant 0 : index
    %c0_20 = arith.constant 0 : index
    %13 = vector.load %arg3[%c1_17, %c0_18, %c0_19, %c0_20] : memref<4x1x1x128xf32, #tpu.memory_space<vmem>>, vector<1x1x1x128xf32>
    %14 = vector.shape_cast %13 : vector<1x1x1x128xf32> to vector<1x1x128xf32>
    %c2_21 = arith.constant 2 : index
    %c0_22 = arith.constant 0 : index
    %c0_23 = arith.constant 0 : index
    %c0_24 = arith.constant 0 : index
    %15 = vector.load %arg3[%c2_21, %c0_22, %c0_23, %c0_24] : memref<4x1x1x128xf32, #tpu.memory_space<vmem>>, vector<1x1x1x128xf32>
    %16 = vector.shape_cast %15 : vector<1x1x1x128xf32> to vector<1x1x128xf32>
    %c3_25 = arith.constant 3 : index
    %c0_26 = arith.constant 0 : index
    %c0_27 = arith.constant 0 : index
    %c0_28 = arith.constant 0 : index
    %17 = vector.load %arg3[%c3_25, %c0_26, %c0_27, %c0_28] : memref<4x1x1x128xf32, #tpu.memory_space<vmem>>, vector<1x1x1x128xf32>
    %18 = vector.shape_cast %17 : vector<1x1x1x128xf32> to vector<1x1x128xf32>
    %19 = arith.subf %8, %4 : vector<2x4x128xf32>
    %20 = arith.subf %10, %6 : vector<2x4x128xf32>
    %21 = arith.mulf %19, %20 : vector<2x4x128xf32>
    %22 = arith.subf %16, %12 : vector<1x1x128xf32>
    %23 = arith.subf %18, %14 : vector<1x1x128xf32>
    %24 = arith.mulf %22, %23 : vector<1x1x128xf32>
    %25 = vector.broadcast %16 : vector<1x1x128xf32> to vector<2x4x128xf32>
    %26 = arith.minimumf %8, %25 : vector<2x4x128xf32>
    %27 = vector.broadcast %12 : vector<1x1x128xf32> to vector<2x4x128xf32>
    %28 = arith.maximumf %4, %27 : vector<2x4x128xf32>
    %29 = arith.subf %26, %28 : vector<2x4x128xf32>
    %cst = arith.constant 0.000000e+00 : f32
    %30 = vector.broadcast %cst : f32 to vector<2x4x128xf32>
    %31 = arith.maximumf %29, %30 : vector<2x4x128xf32>
    %32 = vector.broadcast %18 : vector<1x1x128xf32> to vector<2x4x128xf32>
    %33 = arith.minimumf %10, %32 : vector<2x4x128xf32>
    %34 = vector.broadcast %14 : vector<1x1x128xf32> to vector<2x4x128xf32>
    %35 = arith.maximumf %6, %34 : vector<2x4x128xf32>
    %36 = arith.subf %33, %35 : vector<2x4x128xf32>
    %cst_29 = arith.constant 0.000000e+00 : f32
    %37 = vector.broadcast %cst_29 : f32 to vector<2x4x128xf32>
    %38 = arith.maximumf %36, %37 : vector<2x4x128xf32>
    %39 = arith.mulf %31, %38 : vector<2x4x128xf32>
    %40 = vector.broadcast %24 : vector<1x1x128xf32> to vector<2x4x128xf32>
    %41 = arith.addf %21, %40 : vector<2x4x128xf32>
    %42 = arith.subf %41, %39 : vector<2x4x128xf32>
    %cst_30 = arith.constant 1.000000e-07 : f32
    %43 = vector.broadcast %cst_30 : f32 to vector<2x4x128xf32>
    %44 = arith.maximumf %42, %43 : vector<2x4x128xf32>
    %45 = vector.broadcast %16 : vector<1x1x128xf32> to vector<2x4x128xf32>
    %46 = arith.maximumf %8, %45 : vector<2x4x128xf32>
    %47 = vector.broadcast %12 : vector<1x1x128xf32> to vector<2x4x128xf32>
    %48 = arith.minimumf %4, %47 : vector<2x4x128xf32>
    %49 = arith.subf %46, %48 : vector<2x4x128xf32>
    %cst_31 = arith.constant 0.000000e+00 : f32
    %50 = vector.broadcast %cst_31 : f32 to vector<2x4x128xf32>
    %51 = arith.maximumf %49, %50 : vector<2x4x128xf32>
    %52 = vector.broadcast %18 : vector<1x1x128xf32> to vector<2x4x128xf32>
    %53 = arith.maximumf %10, %52 : vector<2x4x128xf32>
    %54 = vector.broadcast %14 : vector<1x1x128xf32> to vector<2x4x128xf32>
    %55 = arith.minimumf %6, %54 : vector<2x4x128xf32>
    %56 = arith.subf %53, %55 : vector<2x4x128xf32>
    %cst_32 = arith.constant 0.000000e+00 : f32
    %57 = vector.broadcast %cst_32 : f32 to vector<2x4x128xf32>
    %58 = arith.maximumf %56, %57 : vector<2x4x128xf32>
    %59 = arith.mulf %51, %58 : vector<2x4x128xf32>
    %cst_33 = arith.constant 1.000000e-07 : f32
    %60 = vector.broadcast %cst_33 : f32 to vector<2x4x128xf32>
    %61 = arith.maximumf %59, %60 : vector<2x4x128xf32>
    %62 = arith.subf %44, %39 : vector<2x4x128xf32>
    %63 = arith.mulf %62, %61 : vector<2x4x128xf32>
    %64 = arith.subf %61, %44 : vector<2x4x128xf32>
    %65 = arith.mulf %64, %44 : vector<2x4x128xf32>
    %66 = arith.addf %63, %65 : vector<2x4x128xf32>
    %67 = arith.mulf %44, %61 : vector<2x4x128xf32>
    %68 = arith.divf %66, %67 : vector<2x4x128xf32>
    %69 = vector.extract_strided_slice %68 {offsets = [0, 0, 0], sizes = [1, 4, 128], strides = [1, 1, 1]} : vector<2x4x128xf32> to vector<1x4x128xf32>
    %70 = vector.shape_cast %69 : vector<1x4x128xf32> to vector<4x128xf32>
    %71 = vector.extract_strided_slice %68 {offsets = [1, 0, 0], sizes = [1, 4, 128], strides = [1, 1, 1]} : vector<2x4x128xf32> to vector<1x4x128xf32>
    %72 = vector.shape_cast %71 : vector<1x4x128xf32> to vector<4x128xf32>
    %c0_34 = arith.constant 0 : index
    %c0_35 = arith.constant 0 : index
    %73 = vector.load %arg5[%c0_34, %c0_35] : memref<4x1xf32, #tpu.memory_space<vmem>>, vector<4x1xf32>
    %c0_36 = arith.constant 0 : index
    %c0_37 = arith.constant 0 : index
    %74 = vector.load %arg6[%c0_36, %c0_37] : memref<4x1xf32, #tpu.memory_space<vmem>>, vector<4x1xf32>
    %75 = arith.addf %70, %72 : vector<4x128xf32>
    %76 = vector.broadcast %73 : vector<4x1xf32> to vector<4x128xf32>
    %77 = arith.mulf %76, %75 : vector<4x128xf32>
    %78 = arith.minimumf %70, %72 : vector<4x128xf32>
    %79 = vector.broadcast %74 : vector<4x1xf32> to vector<4x128xf32>
    %80 = arith.mulf %79, %78 : vector<4x128xf32>
    %81 = arith.addf %77, %80 : vector<4x128xf32>
    %c0_38 = arith.constant 0 : index
    %c0_39 = arith.constant 0 : index
    %82 = vector.load %arg4[%c0_38, %c0_39] : memref<1x128xf32, #tpu.memory_space<vmem>>, vector<1x128xf32>
    %c0_40 = arith.constant 0 : index
    %c0_41 = arith.constant 0 : index
    %83 = vector.load %arg8[%c0_40, %c0_41] : memref<4x128xf32, #tpu.memory_space<vmem>>, vector<4x128xf32>
    %84 = vector.broadcast %82 : vector<1x128xf32> to vector<4x128xf32>
    %85 = arith.mulf %81, %84 : vector<4x128xf32>
    %86 = arith.addf %83, %85 : vector<4x128xf32>
    %c0_42 = arith.constant 0 : index
    %c0_43 = arith.constant 0 : index
    %87 = vector.load %arg8[%c0_42, %c0_43] : memref<4x128xf32, #tpu.memory_space<vmem>>, vector<4x128xf32>
    tpu.vector_store %arg8[%c0_42, %c0_43], %86 {strides = array<i32>} : memref<4x128xf32, #tpu.memory_space<vmem>>, vector<4x128xf32>,
    %c0_i32_44 = arith.constant 0 : i32
    %88 = arith.cmpi eq, %arg1, %c0_i32_44 : i32
    %89 = arith.extui %88 : i1 to i32
    %c0_i32_45 = arith.constant 0 : i32
    %90 = arith.cmpi ne, %89, %c0_i32_45 : i32
    scf.if %90 {
      %c0_46 = arith.constant 0 : index
      %c0_47 = arith.constant 0 : index
      %91 = vector.load %arg8[%c0_46, %c0_47] : memref<4x128xf32, #tpu.memory_space<vmem>>, vector<4x128xf32>
      %cst_48 = arith.constant dense<0.000000e+00> : vector<128xf32>
      %92 = vector.multi_reduction <add>, %91, %cst_48 [0] : vector<4x128xf32> to vector<128xf32>
      %93 = vector.shape_cast %92 : vector<128xf32> to vector<1x128xf32>
      %cst_49 = arith.constant 0.001953125 : f32
      %94 = vector.broadcast %cst_49 : f32 to vector<1x128xf32>
      %95 = arith.mulf %93, %94 : vector<1x128xf32>
      %c0_50 = arith.constant 0 : index
      %c0_51 = arith.constant 0 : index
      %c0_52 = arith.constant 0 : index
      %96 = vector.load %arg7[%c0_50, %c0_51, %c0_52] : memref<1x1x128xf32, #tpu.memory_space<vmem>>, vector<1x1x128xf32>
      %97 = vector.shape_cast %96 : vector<1x1x128xf32> to vector<1x128xf32>
      %98 = vector.shape_cast %95 : vector<1x128xf32> to vector<1x1x128xf32>
      tpu.vector_store %arg7[%c0_50, %c0_51, %c0_52], %98 {strides = array<i32>} : memref<1x1x128xf32, #tpu.memory_space<vmem>>, vector<1x1x128xf32>,
    } else {
    }
    return
  }
  func.func @transform_0(%arg0: i32, %arg1: i32) -> (i32, i32, i32, i32) {
    %c1_i32 = arith.constant 1 : i32
    %0 = arith.muli %arg0, %c1_i32 : i32
    %1 = arith.addi %0, %arg1 : i32
    %c0_i32 = arith.constant 0 : i32
    %c0_i32_0 = arith.constant 0 : i32
    %c0_i32_1 = arith.constant 0 : i32
    %c0_i32_2 = arith.constant 0 : i32
    return %c0_i32, %c0_i32_0, %c0_i32_1, %1 : i32, i32, i32, i32
  }
  func.func @transform_1(%arg0: i32, %arg1: i32) -> (i32, i32, i32, i32) {
    %c1_i32 = arith.constant 1 : i32
    %0 = arith.muli %arg0, %c1_i32 : i32
    %1 = arith.addi %0, %arg1 : i32
    %c0_i32 = arith.constant 0 : i32
    %c0_i32_0 = arith.constant 0 : i32
    %c0_i32_1 = arith.constant 0 : i32
    %c0_i32_2 = arith.constant 0 : i32
    return %c0_i32, %c0_i32_0, %c0_i32_1, %1 : i32, i32, i32, i32
  }
  func.func @transform_2(%arg0: i32, %arg1: i32) -> (i32, i32) {
    %c1_i32 = arith.constant 1 : i32
    %0 = arith.muli %arg0, %c1_i32 : i32
    %1 = arith.addi %0, %arg1 : i32
    %c0_i32 = arith.constant 0 : i32
    %c0_i32_0 = arith.constant 0 : i32
    return %c0_i32, %1 : i32, i32
  }
  func.func @transform_3(%arg0: i32, %arg1: i32) -> (i32, i32) {
    %c0_i32 = arith.constant 0 : i32
    %c0_i32_0 = arith.constant 0 : i32
    %c0_i32_1 = arith.constant 0 : i32
    return %c0_i32, %c0_i32_0 : i32, i32
  }
  func.func @transform_4(%arg0: i32, %arg1: i32) -> (i32, i32) {
    %c0_i32 = arith.constant 0 : i32
    %c0_i32_0 = arith.constant 0 : i32
    %c0_i32_1 = arith.constant 0 : i32
    return %c0_i32, %c0_i32_0 : i32, i32
  }
  func.func @transform_5(%arg0: i32, %arg1: i32) -> (i32, i32, i32) {
    %c0_i32 = arith.constant 0 : i32
    %c0_i32_0 = arith.constant 0 : i32
    %c0_i32_1 = arith.constant 0 : i32
    return %arg0, %c0_i32, %c0_i32_0 : i32, i32, i32
  }
}

</mosaic_0001>

<llo_original>
// kernel: tpu_custom_call.1
$region0: #{tpu_custom_call.1}
  #allocation0 [shape = 'u32[]', space=smem, size = 0x4, offset = 0x4, fixed_abs, tag = 'smem constant byte address 0x4 - core index']
  #allocation1 [shape = 'u32[144,128]{1,0:T(1,128)}', space=vmem, size = 0x12000, scoped, tag = 'internal scratch']
  #allocation2 [shape = 'f32[4,128]{1,0:T(4,128)}', space=vmem, size = 0x800, scoped, tag = 'scratch operand']
  %s0 = inlined_call_operand.hbm [shape: f32[4,2,4,256], index: 0, kind: input, shape index: {}]
  %s1 = inlined_call_operand.vmem [shape: f32[4,1,1,256], index: 1, kind: input, shape index: {}]
  %s2 = inlined_call_operand.vmem [shape: f32[1,256], index: 2, kind: input, shape index: {}]
  %s3 = inlined_call_operand.vmem [shape: f32[4,1], index: 3, kind: input, shape index: {}]
  %s4 = inlined_call_operand.vmem [shape: f32[4,1], index: 4, kind: input, shape index: {}]
  %s5 = inlined_call_operand.hbm [shape: f32[2,1,128], index: 5, kind: output, shape index: {}]
  %s6 = sld [smem:[#allocation0]]
  $region99: #{tpu_custom_call.1} parent=0
    _
  %s8 = ssub.s32 1, %s6
  %s9 = scalar_select 0, %s8, %s6
  $region1: #{tpu_custom_call.1} parent=0
    #allocation3 [shape = 'u8[32768]{0}', space=vmem, size = 0x8000, scoped, tag = 'input window, operand 0']
    #allocation4 [shape = 's32[2]{0}', space=sflag, size = 0x8, scoped, tag = 'scoped memory for tpu_custom_call.1']
    #allocation5 [shape = 's32[2]{0}', space=sflag, size = 0x8, scoped, tag = 'scoped memory for tpu_custom_call.1']
    #allocation6 [shape = 'u8[4096]{0}', space=vmem, size = 0x1000, scoped, tag = 'input window, operand 1']
    #allocation7 [shape = 'u8[1024]{0}', space=vmem, size = 0x400, scoped, tag = 'output window, operand 0']
    %10 = vsyncpa [#allocation4], 0
    %s11 = scalar_lea.sflag [#allocation4], 1
    %12 = vsyncpa %s11, 0
    %13 = vsyncpa [#allocation5], 0
    %s14 = scalar_lea.sflag [#allocation5], 1
    %15 = vsyncpa %s14, 0
    loop: start=0, step=1, limit=4
    $region2: #{tpu_custom_call.1} parent=1 // loop_pre_header
      _
    $region3: #{tpu_custom_call.1} parent=1 // loop_header
      %s17 = sphi 0, %s21
      %p18 = scmp.ge.s32.totalorder %s17, 4
      %s24 = sphi 0, %s36
      %s25 = sphi 0, %s32
      %s26 = sphi 0, %s24
      %s27 = sphi 0, %s25
      %s28 = sphi 0, %s26
      %s29 = sphi 0, %s27
      %s41 = sphi 0, %s43
      %s44 = sphi 0, %s41
      %s45 = sphi 0, %s44
      %s61 = sphi 0, %s45
      %s69 = sphi 0, %s71
      %s72 = sphi 0, %s69
      %s73 = sphi 0, %s72
      %s89 = sphi 0, %s73
      %s97 = sphi 0, %s99
      %s100 = sphi 0, %s97
      %s101 = sphi 0, %s100
      %s117 = sphi 0, %s101
      %s121 = sphi 0, %s121
      %s123 = sphi 0, %s121
      %s124 = sphi 0, %s123
      %s138 = sphi 0, %s124
      %s142 = sphi 0, %s142
      %s144 = sphi 0, %s142
      %s145 = sphi 0, %s144
      %s159 = sphi 0, %s145
      %s165 = sphi 0, %s167
      %s168 = sphi 0, %s165
      %s169 = sphi 0, %s168
      %s185 = sphi 0, %s169
    $region4: #{tpu_custom_call.1} parent=1 // loop_header_branch
      %20 = sbr.rel (%p18) target = $region8
    $region5: #{tpu_custom_call.1} parent=1 // loop_body
      %s22 = ssub.s32 %s17, 1
      %s23 = ssub.s32 %s17, 2
      %s30 = sadd.s32 1, %s25
      %p31 = scmp.ge.s32.totalorder %s30, 1
      %s32 = scalar_select %p31, 0, %s30
      %s33 = sadd.s32 1, %s24
      %s34 = scalar_select %p31, %s33, %s24
      %p35 = scmp.ge.s32.totalorder %s34, 2
      %s36 = scalar_select %p35, 0, %s34
      %s37 = sadd.s32 %s24, %s25
      %s38 = sadd.s32 %s36, %s32
      %s39 = ssub.s32 %s37, %s38
      %p40 = scmp.eq.s32.totalorder %s39, 0
      %s42 = sadd.s32 %s41, 1
      %s43 = scalar_select %p40, %s41, %s42
      %p46 = pneg %p40
      %p47 = scmp.eq.s32.totalorder %s17, 1
      %p48 = por %p46, %p47
      %p49 = scmp.ne.s32.totalorder %s41, %s44
      %p50 = scmp.eq.s32.totalorder %s17, 0
      %p51 = por %p49, %p50
      %p52 = scmp.ne.s32.totalorder %s41, %s44
      %p53 = scmp.eq.s32.totalorder %s22, 1
      %p54 = por %p52, %p53
      %p55 = scmp.ne.s32.totalorder %s44, %s45
      %p56 = scmp.eq.s32.totalorder %s22, 0
      %p57 = por %p55, %p56
      %p58 = scmp.ne.s32.totalorder %s44, %s45
      %p59 = scmp.eq.s32.totalorder %s23, 1
      %p60 = por %p58, %p59
      %p62 = scmp.ne.s32.totalorder %s45, %s61
      %p63 = scmp.eq.s32.totalorder %s23, 0
      %p64 = por %p62, %p63
      %s65 = sadd.s32 %s24, %s25
      %s66 = sadd.s32 %s36, %s32
      %s67 = ssub.s32 %s65, %s66
      %p68 = scmp.eq.s32.totalorder %s67, 0
      %s70 = sadd.s32 %s69, 1
      %s71 = scalar_select %p68, %s69, %s70
      %p74 = pneg %p68
      %p75 = scmp.eq.s32.totalorder %s17, 1
      %p76 = por %p74, %p75
      %p77 = scmp.ne.s32.totalorder %s69, %s72
      %p78 = scmp.eq.s32.totalorder %s17, 0
      %p79 = por %p77, %p78
      %p80 = scmp.ne.s32.totalorder %s69, %s72
      %p81 = scmp.eq.s32.totalorder %s22, 1
      %p82 = por %p80, %p81
      %p83 = scmp.ne.s32.totalorder %s72, %s73
      %p84 = scmp.eq.s32.totalorder %s22, 0
      %p85 = por %p83, %p84
      %p86 = scmp.ne.s32.totalorder %s72, %s73
      %p87 = scmp.eq.s32.totalorder %s23, 1
      %p88 = por %p86, %p87
      %p90 = scmp.ne.s32.totalorder %s73, %s89
      %p91 = scmp.eq.s32.totalorder %s23, 0
      %p92 = por %p90, %p91
      %s93 = sadd.s32 %s24, %s25
      %s94 = sadd.s32 %s36, %s32
      %s95 = ssub.s32 %s93, %s94
      %p96 = scmp.eq.s32.totalorder %s95, 0
      %s98 = sadd.s32 %s97, 1
      %s99 = scalar_select %p96, %s97, %s98
      %p102 = pneg %p96
      %p103 = scmp.eq.s32.totalorder %s17, 1
      %p104 = por %p102, %p103
      %p105 = scmp.ne.s32.totalorder %s97, %s100
      %p106 = scmp.eq.s32.totalorder %s17, 0
      %p107 = por %p105, %p106
      %p108 = scmp.ne.s32.totalorder %s97, %s100
      %p109 = scmp.eq.s32.totalorder %s22, 1
      %p110 = por %p108, %p109
      %p111 = scmp.ne.s32.totalorder %s100, %s101
      %p112 = scmp.eq.s32.totalorder %s22, 0
      %p113 = por %p111, %p112
      %p114 = scmp.ne.s32.totalorder %s100, %s101
      %p115 = scmp.eq.s32.totalorder %s23, 1
      %p116 = por %p114, %p115
      %p118 = scmp.ne.s32.totalorder %s101, %s117
      %p119 = scmp.eq.s32.totalorder %s23, 0
      %p120 = por %p118, %p119
      %s122 = sadd.s32 %s121, 1
      %p125 = scmp.eq.s32.totalorder %s17, 1
      %p126 = scmp.ne.s32.totalorder %s121, %s123
      %p127 = scmp.eq.s32.totalorder %s17, 0
      %p128 = por %p126, %p127
      %p129 = scmp.ne.s32.totalorder %s121, %s123
      %p130 = scmp.eq.s32.totalorder %s22, 1
      %p131 = por %p129, %p130
      %p132 = scmp.ne.s32.totalorder %s123, %s124
      %p133 = scmp.eq.s32.totalorder %s22, 0
      %p134 = por %p132, %p133
      %p135 = scmp.ne.s32.totalorder %s123, %s124
      %p136 = scmp.eq.s32.totalorder %s23, 1
      %p137 = por %p135, %p136
      %p139 = scmp.ne.s32.totalorder %s124, %s138
      %p140 = scmp.eq.s32.totalorder %s23, 0
      %p141 = por %p139, %p140
      %s143 = sadd.s32 %s142, 1
      %p146 = scmp.eq.s32.totalorder %s17, 1
      %p147 = scmp.ne.s32.totalorder %s142, %s144
      %p148 = scmp.eq.s32.totalorder %s17, 0
      %p149 = por %p147, %p148
      %p150 = scmp.ne.s32.totalorder %s142, %s144
      %p151 = scmp.eq.s32.totalorder %s22, 1
      %p152 = por %p150, %p151
      %p153 = scmp.ne.s32.totalorder %s144, %s145
      %p154 = scmp.eq.s32.totalorder %s22, 0
      %p155 = por %p153, %p154
      %p156 = scmp.ne.s32.totalorder %s144, %s145
      %p157 = scmp.eq.s32.totalorder %s23, 1
      %p158 = por %p156, %p157
      %p160 = scmp.ne.s32.totalorder %s145, %s159
      %p161 = scmp.eq.s32.totalorder %s23, 0
      %p162 = por %p160, %p161
      %s163 = ssub.s32 %s24, %s36
      %p164 = scmp.eq.s32.totalorder %s163, 0
      %s166 = sadd.s32 %s165, 1
      %s167 = scalar_select %p164, %s165, %s166
      %p170 = pneg %p164
      %p171 = scmp.eq.s32.totalorder %s17, 1
      %p172 = por %p170, %p171
      %p173 = scmp.ne.s32.totalorder %s165, %s168
      %p174 = scmp.eq.s32.totalorder %s17, 0
      %p175 = por %p173, %p174
      %p176 = scmp.ne.s32.totalorder %s165, %s168
      %p177 = scmp.eq.s32.totalorder %s22, 1
      %p178 = por %p176, %p177
      %p179 = scmp.ne.s32.totalorder %s168, %s169
      %p180 = scmp.eq.s32.totalorder %s22, 0
      %p181 = por %p179, %p180
      %p182 = scmp.ne.s32.totalorder %s168, %s169
      %p183 = scmp.eq.s32.totalorder %s23, 1
      %p184 = por %p182, %p183
      %p186 = scmp.ne.s32.totalorder %s169, %s185
      %p187 = scmp.eq.s32.totalorder %s23, 0
      %p188 = por %p186, %p187
      %p189 = scmp.le.s32.totalorder 1, %s17
      %p190 = scmp.lt.s32.totalorder %s17, 3
      %p191 = pnand %p189, %p190
      %p192 = pneg %p191
      // Predicated region
      $region9: #{tpu_custom_call.1} parent=5 // pred_check
        _
      $region10: #{tpu_custom_call.1} parent=5 // pred_check_branch
        %194 = sbr.rel (%p191) target = $region12
      $region11: #{tpu_custom_call.1} parent=5 // pred_region
        %s195 = ssub.s32 %s17, 1
        // Predicated region
        $region13: #{tpu_custom_call.1} parent=11 // pred_check
          %p196 = pneg %p134
        $region14: #{tpu_custom_call.1} parent=11 // pred_check_branch
          %198 = sbr.rel (%p196) target = $region16
        $region15: #{tpu_custom_call.1} parent=11 // pred_region
          _
        $region16: #{tpu_custom_call.1} parent=11 // pred_fallthru
          _
        // Predicated region
        $region17: #{tpu_custom_call.1} parent=11 // pred_check
          %p199 = pneg %p155
        $region18: #{tpu_custom_call.1} parent=11 // pred_check_branch
          %201 = sbr.rel (%p199) target = $region20
        $region19: #{tpu_custom_call.1} parent=11 // pred_region
          _
        $region20: #{tpu_custom_call.1} parent=11 // pred_fallthru
          _
      $region12: #{tpu_custom_call.1} parent=5 // pred_fallthru
        _
      %p202 = scmp.lt.s32.totalorder %s17, 2
      // Predicated region
      $region21: #{tpu_custom_call.1} parent=5 // pred_check
        %p203 = pneg %p202
      $region22: #{tpu_custom_call.1} parent=5 // pred_check_branch
        %205 = sbr.rel (%p203) target = $region24
      $region23: #{tpu_custom_call.1} parent=5 // pred_region
        // Predicated region
        $region25: #{tpu_custom_call.1} parent=23 // pred_check
          %p206 = pneg %p51
        $region26: #{tpu_custom_call.1} parent=23 // pred_check_branch
          %208 = sbr.rel (%p206) target = $region28
        $region27: #{tpu_custom_call.1} parent=23 // pred_region
          %s209 = sand.u32 %s41, 1
          %s210 = scalar_lea.sflag [#allocation4], %s209
          %s211 = sand.u32 %s41, 1
          %s212 = smul.addr %s211, 32
          %s213 = scalar_lea.vmem [#allocation3], %s212
          %s214 = sadd.s32 %s24, %s25
          %s216 = ssub.s32 512, 512
          %217 = vsyncadd %s210, %s216
          %s218 = smul.addr %s214, 64
          %s219 = scalar_lea.hbm %s0, %s218
          %s220 = sshll.u32 %s213, 4
          %s221 = int_to_ptr.vmem [resolvable:$true] %s220
          %226 = dma.hbm_to_vmem [thread:$0]  %s219, 512, %s221, %s210, 128, 64, 4
        $region28: #{tpu_custom_call.1} parent=23 // pred_fallthru
          _
        // Predicated region
        $region29: #{tpu_custom_call.1} parent=23 // pred_check
          %p227 = pneg %p79
        $region30: #{tpu_custom_call.1} parent=23 // pred_check_branch
          %229 = sbr.rel (%p227) target = $region32
        $region31: #{tpu_custom_call.1} parent=23 // pred_region
          %s230 = sand.u32 %s69, 1
          %s231 = sand.u32 %s69, 1
          %s232 = smul.addr %s231, 4
          %s233 = scalar_lea.vmem [#allocation6], %s232
          %s234 = sadd.s32 %s24, %s25
          %s235 = scalar_lea.vmem %s1, %s234
          // Predicated region
          $region33: #{tpu_custom_call.1} parent=31 // pred_check
            _
          $region34: #{tpu_custom_call.1} parent=31 // pred_check_branch
            %237 = sbr.rel (0) target = $region36
          $region35: #{tpu_custom_call.1} parent=31 // pred_region
            // Predicated region
            $region37: #{tpu_custom_call.1} parent=35 // pred_check
              _
            $region38: #{tpu_custom_call.1} parent=35 // pred_check_branch
              %239 = sbr.rel target = $region40
            $region39: #{tpu_custom_call.1} parent=35 // pred_region
              // Predicated region
              $region52: #{tpu_custom_call.1} parent=39 // pred_check
                _
              $region53: #{tpu_custom_call.1} parent=39 // pred_check_branch
                %260 = sbr.rel (0) target = $region55
              $region54: #{tpu_custom_call.1} parent=39 // pred_region
                loop: start=0, step=1, limit=1
                $region56: #{tpu_custom_call.1} parent=54 // loop_pre_header
                  _
                $region57: #{tpu_custom_call.1} parent=54 // loop_header
                  %s263 = sphi 0, %s267
                  %p264 = scmp.ge.s32.totalorder %s263, 1
                  %s268 = sphi %s235, %s235
                  %s269 = sphi %s233, %s233
                $region58: #{tpu_custom_call.1} parent=54 // loop_header_branch
                  %266 = sbr.rel (%p264) target = $region62
                $region59: #{tpu_custom_call.1} parent=54 // loop_body
                  %v270 = vld [vmem:[%s268] sm:$0x1]
                  %271 = vst [vmem:[%s269] sm:$0x1] %v270
                  %v272 = vld [vmem:[%s268 + $0x2] sm:$0x1]
                  %273 = vst [vmem:[%s269 + $0x1] sm:$0x1] %v272
                  %v274 = vld [vmem:[%s268 + $0x4] sm:$0x1]
                  %275 = vst [vmem:[%s269 + $0x2] sm:$0x1] %v274
                  %v276 = vld [vmem:[%s268 + $0x6] sm:$0x1]
                  %277 = vst [vmem:[%s269 + $0x3] sm:$0x1] %v276
                $region60: #{tpu_custom_call.1} parent=54 // loop_footer
                  %s267 = sadd.s32 1, %s263
                $region61: #{tpu_custom_call.1} parent=54 // loop_footer_branch
                  %262 = sbr.rel target = $region57
                $region62: #{tpu_custom_call.1} parent=54 // loop_exit
                  _
              $region55: #{tpu_custom_call.1} parent=39 // pred_fallthru
                _
            $region40: #{tpu_custom_call.1} parent=35 // pred_fallthru
              _
            // Predicated region
            $region41: #{tpu_custom_call.1} parent=35 // pred_check
              _
            $region42: #{tpu_custom_call.1} parent=35 // pred_check_branch
              %241 = sbr.rel (0) target = $region44
            $region43: #{tpu_custom_call.1} parent=35 // pred_region
              loop: start=0, step=1, limit=1
              $region45: #{tpu_custom_call.1} parent=43 // loop_pre_header
                _
              $region46: #{tpu_custom_call.1} parent=43 // loop_header
                %s244 = sphi 0, %s248
                %p245 = scmp.ge.s32.totalorder %s244, 1
                %s249 = sphi %s235, %s235
                %s250 = sphi %s233, %s233
              $region47: #{tpu_custom_call.1} parent=43 // loop_header_branch
                %247 = sbr.rel (%p245) target = $region51
              $region48: #{tpu_custom_call.1} parent=43 // loop_body
                %v251 = vld [vmem:[%s249] sm:$0x1]
                %252 = vst [vmem:[%s250] sm:$0x1] %v251
                %v253 = vld [vmem:[%s249 + $0x2] sm:$0x1]
                %254 = vst [vmem:[%s250 + $0x1] sm:$0x1] %v253
                %v255 = vld [vmem:[%s249 + $0x4] sm:$0x1]
                %256 = vst [vmem:[%s250 + $0x2] sm:$0x1] %v255
                %v257 = vld [vmem:[%s249 + $0x6] sm:$0x1]
                %258 = vst [vmem:[%s250 + $0x3] sm:$0x1] %v257
              $region49: #{tpu_custom_call.1} parent=43 // loop_footer
                %s248 = sadd.s32 1, %s244
              $region50: #{tpu_custom_call.1} parent=43 // loop_footer_branch
                %243 = sbr.rel target = $region46
              $region51: #{tpu_custom_call.1} parent=43 // loop_exit
                _
            $region44: #{tpu_custom_call.1} parent=35 // pred_fallthru
              _
          $region36: #{tpu_custom_call.1} parent=31 // pred_fallthru
            _
          %278 = vnop
        $region32: #{tpu_custom_call.1} parent=23 // pred_fallthru
          _
        // Predicated region
        $region63: #{tpu_custom_call.1} parent=23 // pred_check
          %p279 = pneg %p107
        $region64: #{tpu_custom_call.1} parent=23 // pred_check_branch
          %281 = sbr.rel (%p279) target = $region66
        $region65: #{tpu_custom_call.1} parent=23 // pred_region
          %s282 = sadd.s32 %s24, %s25
          %p283 = scmp.lt.s32.totalorder %s282, 1
          %s284 = scalar_select %p283, %s282, 1
          %s285 = scalar_lea.vmem %s2, %s284
          %s286 = sadd.s32 %s24, %s25
        $region66: #{tpu_custom_call.1} parent=23 // pred_fallthru
          _
      $region24: #{tpu_custom_call.1} parent=5 // pred_fallthru
        _
      %p287 = scmp.le.s32.totalorder 1, %s17
      %p288 = scmp.lt.s32.totalorder %s17, 3
      %p289 = pnand %p287, %p288
      %p290 = pneg %p289
      // Predicated region
      $region67: #{tpu_custom_call.1} parent=5 // pred_check
        _
      $region68: #{tpu_custom_call.1} parent=5 // pred_check_branch
        %292 = sbr.rel (%p289) target = $region70
      $region69: #{tpu_custom_call.1} parent=5 // pred_region
        %s293 = ssub.s32 %s17, 1
        %s294 = sand.u32 %s44, 1
        %s295 = scalar_lea.sflag [#allocation4], %s294
        %s296 = sand.u32 %s44, 1
        %s297 = smul.addr %s296, 32
        %s298 = scalar_lea.vmem [#allocation3], %s297
        // Predicated region
        $region71: #{tpu_custom_call.1} parent=69 // pred_check
          %p299 = pneg %p57
        $region72: #{tpu_custom_call.1} parent=69 // pred_check_branch
          %301 = sbr.rel (%p299) target = $region74
        $region73: #{tpu_custom_call.1} parent=69 // pred_region
          %302 = dma.done %s295, 512
        $region74: #{tpu_custom_call.1} parent=69 // pred_fallthru
          _
        %s303 = sand.u32 %s72, 1
        %s304 = sand.u32 %s72, 1
        %s305 = smul.addr %s304, 4
        %s306 = scalar_lea.vmem [#allocation6], %s305
        // Predicated region
        $region75: #{tpu_custom_call.1} parent=69 // pred_check
          %p307 = pneg %p85
        $region76: #{tpu_custom_call.1} parent=69 // pred_check_branch
          %309 = sbr.rel (%p307) target = $region78
        $region77: #{tpu_custom_call.1} parent=69 // pred_region
          _
        $region78: #{tpu_custom_call.1} parent=69 // pred_fallthru
          _
        %s310 = sand.u32 %s44, 1
        %s311 = scalar_lea.sflag [#allocation4], %s310
        %s312 = sand.u32 %s44, 1
        %s313 = smul.addr %s312, 32
        %s314 = scalar_lea.vmem [#allocation3], %s313
        %p315 = pneg %p57
        %p316 = pneg %p54
        %s317 = sand.u32 %s72, 1
        %s318 = sand.u32 %s72, 1
        %s319 = smul.addr %s318, 4
        %s320 = scalar_lea.vmem [#allocation6], %s319
        %p321 = pneg %p85
        %p322 = pneg %p82
        %s323 = sadd.s32 %s26, %s27
        %p324 = scmp.lt.s32.totalorder %s323, 1
        %s325 = scalar_select %p324, %s323, 1
        %s326 = scalar_lea.vmem %s2, %s325
        %p327 = pneg %p113
        %p328 = pneg %p110
        %p329 = pneg %p134
        %p330 = pneg %p131
        %p331 = pneg %p155
        %p332 = pneg %p152
        %p333 = pneg %p181
        %p334 = pneg %p178
        %s335 = sand.u32 %s168, 1
        %s336 = scalar_lea.sflag [#allocation5], %s335
        %s337 = sand.u32 %s168, 1
        %s338 = scalar_lea.vmem [#allocation7], %s337
        %s339 = sadd.s32 %s26, %s27
        %s340 = sadd.s32 %s26, %s27
        %s341 = sadd.s32 %s26, %s27
        %p342 = scmp.lt.s32.totalorder %s341, 1
        %s343 = scalar_select %p342, %s341, 1
        %s344 = scalar_lea.vmem %s2, %s343
        %s345 = sadd.s32 %s26, %s27
        %p346 = scmp.eq.s32.totalorder %s27, 0
        // Predicated region
        $region79: #{tpu_custom_call.1} parent=69 // pred_check
          %p347 = pneg %p346
        $region80: #{tpu_custom_call.1} parent=69 // pred_check_branch
          %349 = sbr.rel (%p347) target = $region82
        $region81: #{tpu_custom_call.1} parent=69 // pred_region
          %350 = vst [vmem:[#allocation2] sm:$0xf] 0.0
        $region82: #{tpu_custom_call.1} parent=69 // pred_fallthru
          _
        %v351 = vld [vmem:[%s298] sm:$0xf]
        %v352 = vld [vmem:[%s298 + $0x4] sm:$0xf]
        %s353 = scalar_lea.vmem %s298, 8 [#allocation3]
        %v354 = vld [vmem:[%s353] sm:$0xf]
        %v355 = vld [vmem:[%s353 + $0x4] sm:$0xf]
        %s356 = scalar_lea.vmem %s298, 16 [#allocation3]
        %v357 = vld [vmem:[%s356] sm:$0xf]
        %v358 = vld [vmem:[%s356 + $0x4] sm:$0xf]
        %s359 = scalar_lea.vmem %s298, 24 [#allocation3]
        %v360 = vld [vmem:[%s359] sm:$0xf]
        %v361 = vld [vmem:[%s359 + $0x4] sm:$0xf]
        %v362 = vld [vmem:[%s306] sm:$0x1]
        %s363 = scalar_lea.vmem %s306, 1 [#allocation6]
        %v364 = vld [vmem:[%s363] sm:$0x1]
        %s365 = scalar_lea.vmem %s306, 2 [#allocation6]
        %v366 = vld [vmem:[%s365] sm:$0x1]
        %s367 = scalar_lea.vmem %s306, 3 [#allocation6]
        %v368 = vld [vmem:[%s367] sm:$0x1]
        %v369 = vsub.f32 %v357, %v351
        %v370 = vsub.f32 %v358, %v352
        %v371 = vsub.f32 %v360, %v354
        %v372 = vsub.f32 %v361, %v355
        %v373 = vmul.f32 %v369, %v371
        %v374 = vmul.f32 %v370, %v372
        %v375 = vsub.f32 %v366, %v362
        %v376 = vsub.f32 %v368, %v364
        %v377 = vmul.f32 %v375, %v376
        %v379 = vlaneseq
        %v380 = vshrl.u32 %v379, 7
        %v381 = vsub.s32 0, %v380
        %v382 = vrot.slane %v366, %v381
        %v384 = vmin.f32 %v357, %v382
        %v385 = vmin.f32 %v358, %v382
        %v387 = vlaneseq
        %v388 = vshrl.u32 %v387, 7
        %v389 = vsub.s32 0, %v388
        %v390 = vrot.slane %v362, %v389
        %v392 = vmax.f32 %v351, %v390
        %v393 = vmax.f32 %v352, %v390
        %v394 = vsub.f32 %v384, %v392
        %v395 = vsub.f32 %v385, %v393
        %v396 = vmax.f32 %v394, 0.0
        %v397 = vmax.f32 %v395, 0.0
        %v399 = vlaneseq
        %v400 = vshrl.u32 %v399, 7
        %v401 = vsub.s32 0, %v400
        %v402 = vrot.slane %v368, %v401
        %v404 = vmin.f32 %v360, %v402
        %v405 = vmin.f32 %v361, %v402
        %v407 = vlaneseq
        %v408 = vshrl.u32 %v407, 7
        %v409 = vsub.s32 0, %v408
        %v410 = vrot.slane %v364, %v409
        %v412 = vmax.f32 %v354, %v410
        %v413 = vmax.f32 %v355, %v410
        %v414 = vsub.f32 %v404, %v412
        %v415 = vsub.f32 %v405, %v413
        %v416 = vmax.f32 %v414, 0.0
        %v417 = vmax.f32 %v415, 0.0
        %v418 = vmul.f32 %v396, %v416
        %v419 = vmul.f32 %v397, %v417
        %v421 = vlaneseq
        %v422 = vshrl.u32 %v421, 7
        %v423 = vsub.s32 0, %v422
        %v424 = vrot.slane %v377, %v423
        %v426 = vadd.f32 %v373, %v424
        %v427 = vadd.f32 %v374, %v424
        %v428 = vsub.f32 %v426, %v418
        %v429 = vsub.f32 %v427, %v419
        %v430 = vmax.f32 %v428, 1e-07
        %v431 = vmax.f32 %v429, 1e-07
        %v432 = vmax.f32 %v357, %v382
        %v433 = vmax.f32 %v358, %v382
        %v434 = vmin.f32 %v351, %v390
        %v435 = vmin.f32 %v352, %v390
        %v436 = vsub.f32 %v432, %v434
        %v437 = vsub.f32 %v433, %v435
        %v438 = vmax.f32 %v436, 0.0
        %v439 = vmax.f32 %v437, 0.0
        %v440 = vmax.f32 %v360, %v402
        %v441 = vmax.f32 %v361, %v402
        %v442 = vmin.f32 %v354, %v410
        %v443 = vmin.f32 %v355, %v410
        %v444 = vsub.f32 %v440, %v442
        %v445 = vsub.f32 %v441, %v443
        %v446 = vmax.f32 %v444, 0.0
        %v447 = vmax.f32 %v445, 0.0
        %v448 = vmul.f32 %v438, %v446
        %v449 = vmul.f32 %v439, %v447
        %v450 = vmax.f32 %v448, 1e-07
        %v451 = vmax.f32 %v449, 1e-07
        %v452 = vsub.f32 %v430, %v418
        %v453 = vsub.f32 %v431, %v419
        %v454 = vmul.f32 %v452, %v450
        %v455 = vmul.f32 %v453, %v451
        %v456 = vsub.f32 %v450, %v430
        %v457 = vsub.f32 %v451, %v431
        %v458 = vmul.f32 %v456, %v430
        %v459 = vmul.f32 %v457, %v431
        %v460 = vadd.f32 %v454, %v458
        %v461 = vadd.f32 %v455, %v459
        %v462 = vmul.f32 %v430, %v450
        %v463 = vmul.f32 %v431, %v451
        %v464 = vrcp.pop %v462
        %v465 = vmul.f32 %v460, %v464
        %v466 = vrcp.pop %v463
        %v467 = vmul.f32 %v461, %v466
        %v468 = vld [vmem:[%s3] sm:$0xf]
        %v469 = vld [vmem:[%s4] sm:$0xf]
        %v470 = vadd.f32 %v465, %v467
        %472 = vset.pattern.permute.xlu0 0
        %473 = vperm.xlu0 %472, %v468
        %v474 = vpop.permute.xlu0 %473
        %v476 = vmul.f32 %v474, %v470
        %v477 = vmin.f32 %v465, %v467
        %479 = vset.pattern.permute.xlu0 0
        %480 = vperm.xlu0 %479, %v469
        %v481 = vpop.permute.xlu0 %480
        %v483 = vmul.f32 %v481, %v477
        %v484 = vadd.f32 %v476, %v483
        %v485 = vld [vmem:[%s344] sm:$0x1]
        %v486 = vld [vmem:[#allocation2] sm:$0xf]
        %v488 = vlaneseq
        %v489 = vshrl.u32 %v488, 7
        %v490 = vsub.s32 0, %v489
        %v491 = vrot.slane %v485, %v490
        %v493 = vmul.f32 %v484, %v491
        %v494 = vadd.f32 %v486, %v493
        %495 = vst [vmem:[#allocation2] sm:$0xf] %v494
        // Predicated region
        $region83: #{tpu_custom_call.1} parent=69 // pred_check
          %p496 = pneg %p346
        $region84: #{tpu_custom_call.1} parent=69 // pred_check_branch
          %498 = sbr.rel (%p496) target = $region86
        $region85: #{tpu_custom_call.1} parent=69 // pred_region
          %v499 = vld [vmem:[#allocation2] sm:$0xf]
          %vm500 = vcmask 1043456
          %v501 = vsel %vm500, %v499, 0.0
          %v502 = vrot.slane %v501, 4
          %v503 = vadd.f32 %v501, %v502
          %v504 = vrot.slane %v503, 2
          %v505 = vadd.f32 %v503, %v504
          %v506 = vrot.slane %v505, 1
          %v507 = vadd.f32 %v505, %v506
          %v508 = vmul.f32 %v507, 0.001953125
          %509 = vst [vmem:[%s338] sm:$0x1] %v508
        $region86: #{tpu_custom_call.1} parent=69 // pred_fallthru
          _
        %s510 = sand.u32 %s168, 1
        %s511 = scalar_lea.sflag [#allocation5], %s510
        %s512 = sand.u32 %s168, 1
        %s513 = scalar_lea.vmem [#allocation7], %s512
        // Predicated region
        $region87: #{tpu_custom_call.1} parent=69 // pred_check
          %p514 = pneg %p178
        $region88: #{tpu_custom_call.1} parent=69 // pred_check_branch
          %516 = sbr.rel (%p514) target = $region90
        $region89: #{tpu_custom_call.1} parent=69 // pred_region
          %s518 = ssub.s32 16, 16
          %519 = vsyncadd %s511, %s518
          %s520 = smul.addr %s26, 16
          %s521 = scalar_lea.hbm %s5, %s520
          %s523 = sshll.u32 %s513, 4
          %s524 = int_to_ptr.vmem [resolvable:$true] %s523
          %526 = dma.vmem_to_hbm [thread:$0]  %s524, 16, %s521, %s511
        $region90: #{tpu_custom_call.1} parent=69 // pred_fallthru
          _
      $region70: #{tpu_custom_call.1} parent=5 // pred_fallthru
        _
      %p527 = scmp.le.s32.totalorder 2, %s17
      // Predicated region
      $region91: #{tpu_custom_call.1} parent=5 // pred_check
        %p528 = pneg %p527
      $region92: #{tpu_custom_call.1} parent=5 // pred_check_branch
        %530 = sbr.rel (%p528) target = $region94
      $region93: #{tpu_custom_call.1} parent=5 // pred_region
        %s531 = ssub.s32 %s17, 2
        // Predicated region
        $region95: #{tpu_custom_call.1} parent=93 // pred_check
          %p532 = pneg %p184
        $region96: #{tpu_custom_call.1} parent=93 // pred_check_branch
          %534 = sbr.rel (%p532) target = $region98
        $region97: #{tpu_custom_call.1} parent=93 // pred_region
          %s535 = sand.u32 %s169, 1
          %s536 = scalar_lea.sflag [#allocation5], %s535
          %s537 = sand.u32 %s169, 1
          %s538 = scalar_lea.vmem [#allocation7], %s537
          %539 = dma.done %s536, 16
        $region98: #{tpu_custom_call.1} parent=93 // pred_fallthru
          _
      $region94: #{tpu_custom_call.1} parent=5 // pred_fallthru
        _
    $region6: #{tpu_custom_call.1} parent=1 // loop_footer
      %s21 = sadd.s32 1, %s17
    $region7: #{tpu_custom_call.1} parent=1 // loop_footer_branch
      %16 = sbr.rel target = $region3
    $region8: #{tpu_custom_call.1} parent=1 // loop_exit
      _
    %540 = vsyncpa [#allocation4], 1
    %s541 = scalar_lea.sflag [#allocation4], 1
    %542 = vsyncpa %s541, 1
    %543 = vsyncpa [#allocation5], 1
    %s544 = scalar_lea.sflag [#allocation5], 1
    %545 = vsyncpa %s544, 1

</llo_original>
